<compile_context>
chip_gen: v7x
topology: tpu7x:2x2x1
jax: 0.10.0
libtpu: 0.0.40
codegen_flags: <defaults>
</compile_context>

<pallas_src>
import jax
import jax.numpy as jnp
from jax.experimental import pallas as pl
from jax.experimental.pallas import tpu as pltpu


def _round_up(x: int, m: int) -> int:
    return ((x + m - 1) // m) * m


def _cdiv(a: int, b: int) -> int:
    return -(-a // b)


def _sublane(dtype) -> int:
    # Second-minor tiling requirement: 8 for 32-bit, 16 for 16-bit, 32 for 8-bit.
    return max(8, 32 // jnp.dtype(dtype).itemsize)


def _pick_tile(dim: int, align: int, target: int) -> int:
    """Pick a tile size (multiple of `align`, ~<= target) minimizing padding.

    Prefers an exact divisor of the alignment-padded dim (zero extra padding);
    otherwise splits into the fewest ~target-sized chunks so the residual
    padding stays small instead of rounding the dim up to a full fixed tile.
    """
    d = _round_up(dim, align)
    target = max(_round_up(target, align), align)
    if d <= target:
        return d
    units = d // align
    exact = align
    for cand in range(target // align, 0, -1):
        if units % cand == 0:
            exact = cand * align
            break
    if exact * 2 >= target:
        return exact
    n_steps = _cdiv(d, target)
    return _round_up(_cdiv(d, n_steps), align)


def _linear_kernel_f32(w_ref, x_ref, b_ref, o_ref):
    """f32 output: bias-initialized accumulation directly into the resident
    output tile (no VMEM scratch, no finalize pass)."""

    @pl.when(pl.program_id(2) == 0)
    def _init():
        o_ref[...] = jnp.zeros_like(o_ref) + b_ref[...]  # broadcast bias (tm,1)->(tm,tn)

    o_ref[...] += jnp.dot(
        w_ref[...], x_ref[...], preferred_element_type=jnp.float32
    )


def _linear_kernel_acc(w_ref, x_ref, b_ref, o_ref, acc_ref):
    """Generic output dtype: f32 VMEM accumulator (bias-initialized), single
    cast at the last K step."""

    @pl.when(pl.program_id(2) == 0)
    def _init():
        acc_ref[...] = jnp.zeros_like(acc_ref) + b_ref[...]

    acc_ref[...] += jnp.dot(
        w_ref[...], x_ref[...], preferred_element_type=jnp.float32
    )

    @pl.when(pl.program_id(2) == pl.num_programs(2) - 1)
    def _finalize():
        o_ref[...] = acc_ref[...].astype(o_ref.dtype)


def linear_forward(
    w,
    x,
    b,
    *,
    compute_dtype=None,
    tm: int = 512,
    tn: int = 512,
    tk=None,
    small_batch_threshold: int = 1024,
    k_buffers=None,
):
    """y = w @ x + b  (forward pass of the PyTorch `Linear` module).

    w: (output_units, input_units), x: (input_units, batch), b: (output_units, 1).
    compute_dtype: optionally cast w/x (e.g. jnp.bfloat16) to feed the MXU
      native operands; accumulation is always f32 and the output keeps the
      original result dtype.  Default None keeps the input precision.
    k_buffers: optional deeper pipelining (pl.Buffered) on the K-streamed
      operands if profiling shows exposed DMA.
    """
    M, K = w.shape
    K2, N = x.shape
    assert K == K2, "w and x contraction dims must match"
    assert b.shape == (M, 1), "bias must be (output_units, 1)"

    out_dtype = jnp.result_type(w.dtype, x.dtype)
    if compute_dtype is not None:
        w = w.astype(compute_dtype)
        x = x.astype(compute_dtype)
    w_dt, x_dt = jnp.dtype(w.dtype), jnp.dtype(x.dtype)
    b = b.astype(jnp.float32)  # bias is folded into the f32 accumulator init

    # dtype-aware layout alignment (second-minor 8/16/32, minor 128).
    align_m = max(_sublane(w_dt), _sublane(out_dtype), 8)
    align_k = 128  # lane dim of W; also covers X's sublane requirement
    align_n = 128

    if tk is None:
        tk = 512 if w_dt.itemsize >= 4 else 1024

    # Tile selection: minimize padding; stream W exactly once when batch small.
    tm = _pick_tile(M, align_m, tm)
    np_aligned = _round_up(N, align_n)
    if np_aligned <= small_batch_threshold:
        tn = np_aligned  # whole batch in one tile -> grid_n == 1, W read once
    else:
        tn = _pick_tile(N, align_n, tn)
    tk = _pick_tile(K, align_k, tk)

    Mp, Np, Kp = _round_up(M, tm), _round_up(N, tn), _round_up(K, tk)

    # Megacore (v7x has 2 TensorCores): keep >= 2 tiles on the parallel axes
    # when the problem allows it.
    if (Mp // tm) * (Np // tn) == 1 and Mp % (2 * align_m) == 0:
        tm = Mp // 2

    # Zero-pad only what alignment/tiling actually requires (exact for matmul;
    # padded output rows/cols are sliced off afterwards).
    wp = w if (Mp == M and Kp == K) else jnp.pad(w, ((0, Mp - M), (0, Kp - K)))
    xp = x if (Kp == K and Np == N) else jnp.pad(x, ((0, Kp - K), (0, Np - N)))
    bp = b if Mp == M else jnp.pad(b, ((0, Mp - M), (0, 0)))

    grid = (Mp // tm, Np // tn, Kp // tk)

    if k_buffers is not None and k_buffers != 2:
        w_spec = pl.BlockSpec((tm, tk), lambda i, j, k: (i, k),
                              pipeline_mode=pl.Buffered(k_buffers))
        x_spec = pl.BlockSpec((tk, tn), lambda i, j, k: (k, j),
                              pipeline_mode=pl.Buffered(k_buffers))
    else:
        w_spec = pl.BlockSpec((tm, tk), lambda i, j, k: (i, k))
        x_spec = pl.BlockSpec((tk, tn), lambda i, j, k: (k, j))
    b_spec = pl.BlockSpec((tm, 1), lambda i, j, k: (i, 0))
    o_spec = pl.BlockSpec((tm, tn), lambda i, j, k: (i, j))

    if out_dtype == jnp.float32:
        kernel = _linear_kernel_f32
        scratch_shapes = []
        acc_bytes = 0
    else:
        kernel = _linear_kernel_acc
        scratch_shapes = [pltpu.VMEM((tm, tn), jnp.float32)]
        acc_bytes = tm * tn * 4

    # VMEM budget (deep-buffered tiles), capped below 48 MiB so the same
    # config stays safe on v7x (64 MiB physical, 32 MiB scoped default) while
    # still raising v5e's 16 MiB default for the larger tiles.
    nbuf = k_buffers if k_buffers is not None else 2
    vmem_est = (
        nbuf * (tm * tk * w_dt.itemsize + tk * tn * x_dt.itemsize)
        + 2 * (tm * tn * jnp.dtype(out_dtype).itemsize + tm * 4)
        + acc_bytes
    )
    vmem_limit = int(min(48 * 2**20, max(32 * 2**20, vmem_est * 3 // 2)))

    cost = pl.CostEstimate(
        flops=2 * M * N * K + M * N,
        transcendentals=0,
        bytes_accessed=int(
            M * K * w_dt.itemsize * grid[1]      # W read grid_n times
            + K * N * x_dt.itemsize * grid[0]    # X read grid_m times
            + M * 4
            + M * N * jnp.dtype(out_dtype).itemsize
        ),
    )

    yp = pl.pallas_call(
        kernel,
        out_shape=jax.ShapeDtypeStruct((Mp, Np), out_dtype),
        grid_spec=pltpu.PrefetchScalarGridSpec(
            num_scalar_prefetch=0,
            grid=grid,
            in_specs=[w_spec, x_spec, b_spec],
            out_specs=o_spec,
            scratch_shapes=scratch_shapes,
        ),
        compiler_params=pltpu.CompilerParams(
            dimension_semantics=("parallel", "parallel", "arbitrary"),
            vmem_limit_bytes=vmem_limit,
        ),
        cost_estimate=cost,
    )(wp, xp, bp)

    if Mp != M or Np != N:
        yp = yp[:M, :N]
    return yp


# TODO(synk): backward / SGD / Adam / RMSProp state updates of the module are
# optimizer machinery, not part of forward(), and are intentionally not ported.


if __name__ == "__main__":
    key = jax.random.PRNGKey(0)
    kw, kx, kb = jax.random.split(key, 3)

    # Small shapes implied by Linear.forward: x is (input_units, batch).
    input_units, output_units, batch = 32, 16, 8
    w = jax.random.normal(kw, (output_units, input_units), dtype=jnp.float32)
    x = jax.random.normal(kx, (input_units, batch), dtype=jnp.float32)
    b = jax.random.normal(kb, (output_units, 1), dtype=jnp.float32)

    y = jax.block_until_ready(linear_forward(w, x, b))
    ref = jnp.dot(w, x, precision=jax.lax.Precision.HIGHEST) + b
    assert y.shape == (output_units, batch)
    assert jnp.allclose(y, ref, atol=1e-3, rtol=1e-3), "mismatch vs reference Linear"

    # Slightly larger case: exercises multiple K steps, N padding, small-batch
    # (tn = Np) fast path and the megacore split of the M axis.
    kw2, kx2, kb2 = jax.random.split(jax.random.PRNGKey(1), 3)
    M2, K2, N2 = 384, 1024, 200
    w2 = jax.random.normal(kw2, (M2, K2), dtype=jnp.float32)
    x2 = jax.random.normal(kx2, (K2, N2), dtype=jnp.float32)
    b2 = jax.random.normal(kb2, (M2, 1), dtype=jnp.float32)
    y2 = jax.block_until_ready(linear_forward(w2, x2, b2))
    ref2 = jnp.dot(w2, x2, precision=jax.lax.Precision.HIGHEST) + b2
    assert y2.shape == (M2, N2)
    rel_err = jnp.linalg.norm(y2 - ref2) / jnp.linalg.norm(ref2)
    assert rel_err < 1e-2, f"mismatch vs reference Linear (rel err {rel_err})"

    print("KERNEL_OK")
</pallas_src>

<mosaic_0001>
module attributes {stable_mosaic.version = 11 : i64} {
  func.func @_linear_kernel_f32(%arg0: i32, %arg1: i32, %arg2: i32, %arg3: memref<8x128xf32, #tpu.memory_space<vmem>>, %arg4: memref<128x128xf32, #tpu.memory_space<vmem>>, %arg5: memref<8x1xf32, #tpu.memory_space<vmem>>, %arg6: memref<8x128xf32, #tpu.memory_space<vmem>>) attributes {dimension_semantics = [#tpu.dimension_semantics<parallel>, #tpu.dimension_semantics<parallel>, #tpu.dimension_semantics<arbitrary>], iteration_bounds = array<i64: 2, 1, 1>, scalar_prefetch = 0 : i64, scratch_operands = 0 : i64, tpu.core_type = #tpu.core_type<tc>, window_params = [{transform_indices = @transform_0, window_bounds = array<i64: 8, 128>}, {transform_indices = @transform_1, window_bounds = array<i64: 128, 128>}, {transform_indices = @transform_2, window_bounds = array<i64: 8, 1>}, {transform_indices = @transform_3, window_bounds = array<i64: 8, 128>}]} {
    %c0_i32 = arith.constant 0 : i32
    %0 = arith.cmpi eq, %arg2, %c0_i32 : i32
    %1 = arith.extui %0 : i1 to i32
    %c0_i32_0 = arith.constant 0 : i32
    %2 = arith.cmpi ne, %1, %c0_i32_0 : i32
    scf.if %2 {
      %cst_8 = arith.constant 0.000000e+00 : f32
      %9 = vector.broadcast %cst_8 : f32 to vector<8x128xf32>
      %c0_9 = arith.constant 0 : index
      %c0_10 = arith.constant 0 : index
      %10 = vector.load %arg5[%c0_9, %c0_10] : memref<8x1xf32, #tpu.memory_space<vmem>>, vector<8x1xf32>
      %11 = vector.broadcast %10 : vector<8x1xf32> to vector<8x128xf32>
      %12 = arith.addf %9, %11 : vector<8x128xf32>
      %c0_11 = arith.constant 0 : index
      %c0_12 = arith.constant 0 : index
      %13 = vector.load %arg6[%c0_11, %c0_12] : memref<8x128xf32, #tpu.memory_space<vmem>>, vector<8x128xf32>
      tpu.vector_store %arg6[%c0_11, %c0_12], %12 {strides = array<i32>} : memref<8x128xf32, #tpu.memory_space<vmem>>, vector<8x128xf32>,
    } else {
    }
    %c0 = arith.constant 0 : index
    %c0_1 = arith.constant 0 : index
    %3 = vector.load %arg6[%c0, %c0_1] : memref<8x128xf32, #tpu.memory_space<vmem>>, vector<8x128xf32>
    %c0_2 = arith.constant 0 : index
    %c0_3 = arith.constant 0 : index
    %4 = vector.load %arg3[%c0_2, %c0_3] : memref<8x128xf32, #tpu.memory_space<vmem>>, vector<8x128xf32>
    %c0_4 = arith.constant 0 : index
    %c0_5 = arith.constant 0 : index
    %5 = vector.load %arg4[%c0_4, %c0_5] : memref<128x128xf32, #tpu.memory_space<vmem>>, vector<128x128xf32>
    %cst = arith.constant dense<0.000000e+00> : vector<8x128xf32>
    %6 = tpu.matmul %4, %5, %cst {dimension_numbers = #tpu.dot_dimension_numbers<[1], [0], [0], [1], [0, 0, 1, 1], [], []>} : vector<8x128xf32>, vector<128x128xf32>, vector<8x128xf32> -> vector<8x128xf32>
    %7 = arith.addf %3, %6 : vector<8x128xf32>
    %c0_6 = arith.constant 0 : index
    %c0_7 = arith.constant 0 : index
    %8 = vector.load %arg6[%c0_6, %c0_7] : memref<8x128xf32, #tpu.memory_space<vmem>>, vector<8x128xf32>
    tpu.vector_store %arg6[%c0_6, %c0_7], %7 {strides = array<i32>} : memref<8x128xf32, #tpu.memory_space<vmem>>, vector<8x128xf32>,
    return
  }
  func.func @transform_0(%arg0: i32, %arg1: i32, %arg2: i32) -> (i32, i32) {
    %c0_i32 = arith.constant 0 : i32
    return %arg0, %arg2 : i32, i32
  }
  func.func @transform_1(%arg0: i32, %arg1: i32, %arg2: i32) -> (i32, i32) {
    %c0_i32 = arith.constant 0 : i32
    return %arg2, %arg1 : i32, i32
  }
  func.func @transform_2(%arg0: i32, %arg1: i32, %arg2: i32) -> (i32, i32) {
    %c0_i32 = arith.constant 0 : i32
    %c0_i32_0 = arith.constant 0 : i32
    return %arg0, %c0_i32 : i32, i32
  }
  func.func @transform_3(%arg0: i32, %arg1: i32, %arg2: i32) -> (i32, i32) {
    %c0_i32 = arith.constant 0 : i32
    return %arg0, %arg1 : i32, i32
  }
}

</mosaic_0001>

<llo_original>
// kernel: tpu_custom_call.1
$region0: #{tpu_custom_call.1}
  #allocation0 [shape = 'u32[]', space=smem, size = 0x4, offset = 0x4, fixed_abs, tag = 'smem constant byte address 0x4 - core index']
  #allocation1 [shape = 'u32[144,128]{1,0:T(1,128)}', space=vmem, size = 0x12000, scoped, tag = 'internal scratch']
  %s0 = inlined_call_operand.vmem [shape: f32[16,128], index: 0, kind: input, shape index: {}]
  %s1 = inlined_call_operand.hbm [shape: f32[128,128], index: 1, kind: input, shape index: {}]
  %s2 = inlined_call_operand.vmem [shape: f32[16,1], index: 2, kind: input, shape index: {}]
  %s3 = inlined_call_operand.hbm [shape: f32[16,128], index: 3, kind: output, shape index: {}]
  %s4 = sld [smem:[#allocation0]]
  $region53: #{tpu_custom_call.1} parent=0
    _
  %s6 = ssub.s32 1, %s4
  %s7 = scalar_select 0, %s6, %s4
  $region1: #{tpu_custom_call.1} parent=0
    #allocation2 [shape = 'u8[65536]{0}', space=vmem, size = 0x10000, scoped, tag = 'input window, operand 1, single buffered']
    #allocation3 [shape = 's32[2]{0}', space=sflag, size = 0x8, scoped, tag = 'scoped memory for tpu_custom_call.1']
    #allocation4 [shape = 's32[2]{0}', space=sflag, size = 0x8, scoped, tag = 'scoped memory for tpu_custom_call.1']
    #allocation5 [shape = 'u8[8192]{0}', space=vmem, size = 0x2000, scoped, tag = 'output window, operand 0']
    %8 = vsyncpa [#allocation3], 0
    %9 = vsyncpa [#allocation4], 0
    %s10 = scalar_lea.sflag [#allocation4], 1
    %11 = vsyncpa %s10, 0
    loop: start=0, step=1, limit=4
    $region2: #{tpu_custom_call.1} parent=1 // loop_pre_header
      _
    $region3: #{tpu_custom_call.1} parent=1 // loop_header
      %s13 = sphi 0, %s17
      %p14 = scmp.ge.s32.totalorder %s13, 4
      %s20 = sphi 0, %s39
      %s21 = sphi 0, %s35
      %s22 = sphi 0, %s31
      %s23 = sphi 0, %s20
      %s24 = sphi 0, %s21
      %s25 = sphi 0, %s22
      %s26 = sphi 0, %s23
      %s27 = sphi 0, %s24
      %s28 = sphi 0, %s25
      %s44 = sphi 0, %s46
      %s47 = sphi 0, %s44
      %s48 = sphi 0, %s47
      %s64 = sphi 0, %s48
      %s72 = sphi 0, %s74
      %s75 = sphi 0, %s72
      %s76 = sphi 0, %s75
      %s92 = sphi 0, %s76
      %s98 = sphi 0, %s100
      %s101 = sphi 0, %s98
      %s102 = sphi 0, %s101
      %s118 = sphi 0, %s102
      %s126 = sphi 0, %s128
      %s129 = sphi 0, %s126
      %s130 = sphi 0, %s129
      %s146 = sphi 0, %s130
    $region4: #{tpu_custom_call.1} parent=1 // loop_header_branch
      %16 = sbr.rel (%p14) target = $region8
    $region5: #{tpu_custom_call.1} parent=1 // loop_body
      %s18 = ssub.s32 %s13, 1
      %s19 = ssub.s32 %s13, 2
      %s29 = sadd.s32 1, %s22
      %p30 = scmp.ge.s32.totalorder %s29, 1
      %s31 = scalar_select %p30, 0, %s29
      %s32 = sadd.s32 1, %s21
      %s33 = scalar_select %p30, %s32, %s21
      %p34 = scmp.ge.s32.totalorder %s33, 1
      %s35 = scalar_select %p34, 0, %s33
      %s36 = sadd.s32 1, %s20
      %s37 = scalar_select %p34, %s36, %s20
      %p38 = scmp.ge.s32.totalorder %s37, 2
      %s39 = scalar_select %p38, 0, %s37
      %s40 = ssub.s32 %s20, %s39
      %s41 = ssub.s32 %s22, %s31
      %s42 = sor.u32 %s40, %s41
      %p43 = scmp.eq.s32.totalorder %s42, 0
      %s45 = sadd.s32 %s44, 1
      %s46 = scalar_select %p43, %s44, %s45
      %p49 = pneg %p43
      %p50 = scmp.eq.s32.totalorder %s13, 1
      %p51 = por %p49, %p50
      %p52 = scmp.ne.s32.totalorder %s44, %s47
      %p53 = scmp.eq.s32.totalorder %s13, 0
      %p54 = por %p52, %p53
      %p55 = scmp.ne.s32.totalorder %s44, %s47
      %p56 = scmp.eq.s32.totalorder %s18, 1
      %p57 = por %p55, %p56
      %p58 = scmp.ne.s32.totalorder %s47, %s48
      %p59 = scmp.eq.s32.totalorder %s18, 0
      %p60 = por %p58, %p59
      %p61 = scmp.ne.s32.totalorder %s47, %s48
      %p62 = scmp.eq.s32.totalorder %s19, 1
      %p63 = por %p61, %p62
      %p65 = scmp.ne.s32.totalorder %s48, %s64
      %p66 = scmp.eq.s32.totalorder %s19, 0
      %p67 = por %p65, %p66
      %s68 = ssub.s32 %s22, %s31
      %s69 = ssub.s32 %s21, %s35
      %s70 = sor.u32 %s68, %s69
      %p71 = scmp.eq.s32.totalorder %s70, 0
      %s73 = sadd.s32 %s72, 1
      %s74 = scalar_select %p71, %s72, %s73
      %p77 = pneg %p71
      %p78 = scmp.eq.s32.totalorder %s13, 1
      %p79 = por %p77, %p78
      %p80 = scmp.ne.s32.totalorder %s72, %s75
      %p81 = scmp.eq.s32.totalorder %s13, 0
      %p82 = por %p80, %p81
      %p83 = scmp.ne.s32.totalorder %s72, %s75
      %p84 = scmp.eq.s32.totalorder %s18, 1
      %p85 = por %p83, %p84
      %p86 = scmp.ne.s32.totalorder %s75, %s76
      %p87 = scmp.eq.s32.totalorder %s18, 0
      %p88 = por %p86, %p87
      %p89 = scmp.ne.s32.totalorder %s75, %s76
      %p90 = scmp.eq.s32.totalorder %s19, 1
      %p91 = por %p89, %p90
      %p93 = scmp.ne.s32.totalorder %s76, %s92
      %p94 = scmp.eq.s32.totalorder %s19, 0
      %p95 = por %p93, %p94
      %s96 = ssub.s32 %s20, %s39
      %p97 = scmp.eq.s32.totalorder %s96, 0
      %s99 = sadd.s32 %s98, 1
      %s100 = scalar_select %p97, %s98, %s99
      %p103 = pneg %p97
      %p104 = scmp.eq.s32.totalorder %s13, 1
      %p105 = por %p103, %p104
      %p106 = scmp.ne.s32.totalorder %s98, %s101
      %p107 = scmp.eq.s32.totalorder %s13, 0
      %p108 = por %p106, %p107
      %p109 = scmp.ne.s32.totalorder %s98, %s101
      %p110 = scmp.eq.s32.totalorder %s18, 1
      %p111 = por %p109, %p110
      %p112 = scmp.ne.s32.totalorder %s101, %s102
      %p113 = scmp.eq.s32.totalorder %s18, 0
      %p114 = por %p112, %p113
      %p115 = scmp.ne.s32.totalorder %s101, %s102
      %p116 = scmp.eq.s32.totalorder %s19, 1
      %p117 = por %p115, %p116
      %p119 = scmp.ne.s32.totalorder %s102, %s118
      %p120 = scmp.eq.s32.totalorder %s19, 0
      %p121 = por %p119, %p120
      %s122 = ssub.s32 %s20, %s39
      %s123 = ssub.s32 %s21, %s35
      %s124 = sor.u32 %s122, %s123
      %p125 = scmp.eq.s32.totalorder %s124, 0
      %s127 = sadd.s32 %s126, 1
      %s128 = scalar_select %p125, %s126, %s127
      %p131 = pneg %p125
      %p132 = scmp.eq.s32.totalorder %s13, 1
      %p133 = por %p131, %p132
      %p134 = scmp.ne.s32.totalorder %s126, %s129
      %p135 = scmp.eq.s32.totalorder %s13, 0
      %p136 = por %p134, %p135
      %p137 = scmp.ne.s32.totalorder %s126, %s129
      %p138 = scmp.eq.s32.totalorder %s18, 1
      %p139 = por %p137, %p138
      %p140 = scmp.ne.s32.totalorder %s129, %s130
      %p141 = scmp.eq.s32.totalorder %s18, 0
      %p142 = por %p140, %p141
      %p143 = scmp.ne.s32.totalorder %s129, %s130
      %p144 = scmp.eq.s32.totalorder %s19, 1
      %p145 = por %p143, %p144
      %p147 = scmp.ne.s32.totalorder %s130, %s146
      %p148 = scmp.eq.s32.totalorder %s19, 0
      %p149 = por %p147, %p148
      %p150 = scmp.le.s32.totalorder 1, %s13
      %p151 = scmp.lt.s32.totalorder %s13, 3
      %p152 = pnand %p150, %p151
      %p153 = pneg %p152
      // Predicated region
      $region9: #{tpu_custom_call.1} parent=5 // pred_check
        _
      $region10: #{tpu_custom_call.1} parent=5 // pred_check_branch
        %155 = sbr.rel (%p152) target = $region12
      $region11: #{tpu_custom_call.1} parent=5 // pred_region
        %s156 = ssub.s32 %s13, 1
        // Predicated region
        $region13: #{tpu_custom_call.1} parent=11 // pred_check
          %p157 = pneg %p88
        $region14: #{tpu_custom_call.1} parent=11 // pred_check_branch
          %159 = sbr.rel (%p157) target = $region16
        $region15: #{tpu_custom_call.1} parent=11 // pred_region
          %s160 = smul.u32 16, %s25
          %s162 = ssub.s32 2048, 2048
          %163 = vsyncadd [#allocation3], %s162
          %s164 = sadd.s32 %s24, %s160
          %s165 = smul.addr %s164, 128
          %s166 = scalar_lea.hbm %s1, %s165
          %s167 = sshll.u32 [#allocation2], 4
          %s168 = int_to_ptr.vmem [resolvable:$true] %s167
          %173 = dma.hbm_to_vmem [thread:$0]  %s166, 2048, %s168, [#allocation3], 128, 128, 8
        $region16: #{tpu_custom_call.1} parent=11 // pred_fallthru
          _
      $region12: #{tpu_custom_call.1} parent=5 // pred_fallthru
        _
      %p174 = scmp.lt.s32.totalorder %s13, 2
      // Predicated region
      $region17: #{tpu_custom_call.1} parent=5 // pred_check
        %p175 = pneg %p174
      $region18: #{tpu_custom_call.1} parent=5 // pred_check_branch
        %177 = sbr.rel (%p175) target = $region20
      $region19: #{tpu_custom_call.1} parent=5 // pred_region
        // Predicated region
        $region21: #{tpu_custom_call.1} parent=19 // pred_check
          %p178 = pneg %p54
        $region22: #{tpu_custom_call.1} parent=19 // pred_check_branch
          %180 = sbr.rel (%p178) target = $region24
        $region23: #{tpu_custom_call.1} parent=19 // pred_region
          %p181 = scmp.lt.s32.totalorder %s20, 1
          %s182 = scalar_select %p181, %s20, 1
          %p183 = scmp.lt.s32.totalorder %s22, 0
          %s184 = scalar_select %p183, %s22, 0
          %s185 = sadd.s32 %s184, %s182
          %s186 = smul.addr %s185, 8
          %s187 = scalar_lea.vmem %s0, %s186
        $region24: #{tpu_custom_call.1} parent=19 // pred_fallthru
          _
        // Predicated region
        $region25: #{tpu_custom_call.1} parent=19 // pred_check
          %p188 = pneg %p108
        $region26: #{tpu_custom_call.1} parent=19 // pred_check_branch
          %190 = sbr.rel (%p188) target = $region28
        $region27: #{tpu_custom_call.1} parent=19 // pred_region
          %p191 = scmp.lt.s32.totalorder %s20, 1
          %s192 = scalar_select %p191, %s20, 1
          %s193 = smul.addr %s192, 8
          %s194 = scalar_lea.vmem %s2, %s193
        $region28: #{tpu_custom_call.1} parent=19 // pred_fallthru
          _
      $region20: #{tpu_custom_call.1} parent=5 // pred_fallthru
        _
      %p195 = scmp.le.s32.totalorder 1, %s13
      %p196 = scmp.lt.s32.totalorder %s13, 3
      %p197 = pnand %p195, %p196
      %p198 = pneg %p197
      // Predicated region
      $region29: #{tpu_custom_call.1} parent=5 // pred_check
        _
      $region30: #{tpu_custom_call.1} parent=5 // pred_check_branch
        %200 = sbr.rel (%p197) target = $region32
      $region31: #{tpu_custom_call.1} parent=5 // pred_region
        %s201 = ssub.s32 %s13, 1
        // Predicated region
        $region33: #{tpu_custom_call.1} parent=31 // pred_check
          %p202 = pneg %p88
        $region34: #{tpu_custom_call.1} parent=31 // pred_check_branch
          %204 = sbr.rel (%p202) target = $region36
        $region35: #{tpu_custom_call.1} parent=31 // pred_region
          %205 = dma.done [#allocation3], 2048
        $region36: #{tpu_custom_call.1} parent=31 // pred_fallthru
          _
        %p206 = scmp.lt.s32.totalorder %s23, 1
        %s207 = scalar_select %p206, %s23, 1
        %p208 = scmp.lt.s32.totalorder %s25, 0
        %s209 = scalar_select %p208, %s25, 0
        %s210 = sadd.s32 %s209, %s207
        %s211 = smul.addr %s210, 8
        %s212 = scalar_lea.vmem %s0, %s211
        %p213 = pneg %p60
        %p214 = pneg %p57
        %p215 = pneg %p88
        %p216 = pneg %p85
        %p217 = scmp.lt.s32.totalorder %s23, 1
        %s218 = scalar_select %p217, %s23, 1
        %s219 = smul.addr %s218, 8
        %s220 = scalar_lea.vmem %s2, %s219
        %p221 = pneg %p114
        %p222 = pneg %p111
        %p223 = pneg %p142
        %p224 = pneg %p139
        %s225 = sand.u32 %s129, 1
        %s226 = scalar_lea.sflag [#allocation4], %s225
        %s227 = sand.u32 %s129, 1
        %s228 = smul.addr %s227, 8
        %s229 = scalar_lea.vmem [#allocation5], %s228
        %p230 = scmp.lt.s32.totalorder %s23, 1
        %s231 = scalar_select %p230, %s23, 1
        %p232 = scmp.lt.s32.totalorder %s25, 0
        %s233 = scalar_select %p232, %s25, 0
        %s234 = sadd.s32 %s233, %s231
        %s235 = smul.addr %s234, 8
        %s236 = scalar_lea.vmem %s0, %s235
        %s237 = smul.u32 16, %s25
        %p238 = scmp.lt.s32.totalorder %s23, 1
        %s239 = scalar_select %p238, %s23, 1
        %s240 = smul.addr %s239, 8
        %s241 = scalar_lea.vmem %s2, %s240
        %p242 = scmp.eq.s32.totalorder %s25, 0
        // Predicated region
        $region37: #{tpu_custom_call.1} parent=31 // pred_check
          %p243 = pneg %p242
        $region38: #{tpu_custom_call.1} parent=31 // pred_check_branch
          %245 = sbr.rel (%p243) target = $region40
        $region39: #{tpu_custom_call.1} parent=31 // pred_region
          %v246 = vld [vmem:[%s241] sm:$0xff]
          %248 = vset.pattern.permute.xlu0 0
          %249 = vperm.xlu0 %248, %v246
          %v250 = vpop.permute.xlu0 %249
          %v252 = vadd.f32 %v250, 0.0
          %253 = vst [vmem:[%s229] sm:$0xff] %v252
        $region40: #{tpu_custom_call.1} parent=31 // pred_fallthru
          _
        %v254 = vld [vmem:[%s229] sm:$0xff]
        %v255 = vld [vmem:[%s236] sm:$0xff]
        %v256 = vld [vmem:[#allocation2] sm:$0xff]
        %v257 = vld [vmem:[#allocation2 + $0x8] sm:$0xff]
        %v258 = vld [vmem:[#allocation2 + $0x10] sm:$0xff]
        %v259 = vld [vmem:[#allocation2 + $0x18] sm:$0xff]
        %v260 = vld [vmem:[#allocation2 + $0x20] sm:$0xff]
        %v261 = vld [vmem:[#allocation2 + $0x28] sm:$0xff]
        %v262 = vld [vmem:[#allocation2 + $0x30] sm:$0xff]
        %v263 = vld [vmem:[#allocation2 + $0x38] sm:$0xff]
        %v264 = vld [vmem:[#allocation2 + $0x40] sm:$0xff]
        %v265 = vld [vmem:[#allocation2 + $0x48] sm:$0xff]
        %v266 = vld [vmem:[#allocation2 + $0x50] sm:$0xff]
        %v267 = vld [vmem:[#allocation2 + $0x58] sm:$0xff]
        %v268 = vld [vmem:[#allocation2 + $0x60] sm:$0xff]
        %v269 = vld [vmem:[#allocation2 + $0x68] sm:$0xff]
        %v270 = vld [vmem:[#allocation2 + $0x70] sm:$0xff]
        %v271 = vld [vmem:[#allocation2 + $0x78] sm:$0xff]
        %272 = vmatprep.subr.mxu0 0.0
        %273 = vmatpush1.msra.mxu0 %v256
        %274 = vmatprep.subr.mxu0 0.0
        %275 = vmatpush1.msra.mxu0 %v257
        %276 = vmatprep.subr.mxu0 0.0
        %277 = vmatpush1.msra.mxu0 %v258
        %278 = vmatprep.subr.mxu0 0.0
        %279 = vmatpush1.msra.mxu0 %v259
        %280 = vmatprep.subr.mxu0 0.0
        %281 = vmatpush1.msra.mxu0 %v260
        %282 = vmatprep.subr.mxu0 0.0
        %283 = vmatpush1.msra.mxu0 %v261
        %284 = vmatprep.subr.mxu0 0.0
        %285 = vmatpush1.msra.mxu0 %v262
        %286 = vmatprep.subr.mxu0 0.0
        %287 = vmatpush1.msra.mxu0 %v263
        %288 = vmatprep.subr.mxu0 0.0
        %289 = vmatpush1.msra.mxu0 %v264
        %290 = vmatprep.subr.mxu0 0.0
        %291 = vmatpush1.msra.mxu0 %v265
        %292 = vmatprep.subr.mxu0 0.0
        %293 = vmatpush1.msra.mxu0 %v266
        %294 = vmatprep.subr.mxu0 0.0
        %295 = vmatpush1.msra.mxu0 %v267
        %296 = vmatprep.subr.mxu0 0.0
        %297 = vmatpush1.msra.mxu0 %v268
        %298 = vmatprep.subr.mxu0 0.0
        %299 = vmatpush1.msra.mxu0 %v269
        %300 = vmatprep.subr.mxu0 0.0
        %301 = vmatpush1.msra.mxu0 %v270
        %302 = vmatprep.subr.mxu0 0.0
        %303 = vmatpush1.msra.mxu0 %v271
        %304 = vmatprep.subr.mxu0 0.0
        %305 = vmatpush1.msra.mxu0 0.0
        %306 = vmatprep.subr.mxu0 0.0
        %307 = vmatpush1.msra.mxu0 0.0
        %308 = vmatprep.subr.mxu0 0.0
        %309 = vmatpush1.msra.mxu0 0.0
        %310 = vmatprep.subr.mxu0 0.0
        %311 = vmatpush1.msra.mxu0 0.0
        %312 = vmatprep.subr.mxu0 0.0
        %313 = vmatpush1.msra.mxu0 0.0
        %314 = vmatprep.subr.mxu0 0.0
        %315 = vmatpush1.msra.mxu0 0.0
        %316 = vmatprep.subr.mxu0 0.0
        %317 = vmatpush1.msra.mxu0 0.0
        %318 = vmatprep.subr.mxu0 0.0
        %319 = vmatpush1.msra.mxu0 0.0
        %320 = vmatprep.subr.mxu0 0.0
        %321 = vmatpush1.msra.mxu0 0.0
        %322 = vmatprep.subr.mxu0 0.0
        %323 = vmatpush1.msra.mxu0 0.0
        %324 = vmatprep.subr.mxu0 0.0
        %325 = vmatpush1.msra.mxu0 0.0
        %326 = vmatprep.subr.mxu0 0.0
        %327 = vmatpush1.msra.mxu0 0.0
        %328 = vmatprep.subr.mxu0 0.0
        %329 = vmatpush1.msra.mxu0 0.0
        %330 = vmatprep.subr.mxu0 0.0
        %331 = vmatpush1.msra.mxu0 0.0
        %332 = vmatprep.subr.mxu0 0.0
        %333 = vmatpush1.msra.mxu0 0.0
        %334 = vmatprep.subr.mxu0 0.0
        %335 = vmatpush1.msra.mxu0 0.0
        %336 = vmatprep.mubr.f32.mxu0 0.0
        %337 = vmatmul.mubr.f32.gmra.mrb[0].mxu0 %v255
        %v338 = vpop.f32.mrb[0].mxu0
        %v339 = vadd.f32 0.0, %v338
        %v340 = vpop.f32.mrb[0].mxu0
        %341 = vdwg.mxu0
        %v342 = vadd.f32 %v254, %v339
        %343 = vst [vmem:[%s229] sm:$0xff] %v342
        %s344 = sand.u32 %s129, 1
        %s345 = scalar_lea.sflag [#allocation4], %s344
        %s346 = sand.u32 %s129, 1
        %s347 = smul.addr %s346, 8
        %s348 = scalar_lea.vmem [#allocation5], %s347
        // Predicated region
        $region41: #{tpu_custom_call.1} parent=31 // pred_check
          %p349 = pneg %p139
        $region42: #{tpu_custom_call.1} parent=31 // pred_check_branch
          %351 = sbr.rel (%p349) target = $region44
        $region43: #{tpu_custom_call.1} parent=31 // pred_region
          %s353 = ssub.s32 128, 128
          %354 = vsyncadd %s345, %s353
          %s355 = sadd.s32 %s24, %s23
          %s356 = smul.addr %s355, 128
          %s357 = scalar_lea.hbm %s3, %s356
          %s359 = sshll.u32 %s348, 4
          %s360 = int_to_ptr.vmem [resolvable:$true] %s359
          %362 = dma.vmem_to_hbm [thread:$0]  %s360, 128, %s357, %s345
        $region44: #{tpu_custom_call.1} parent=31 // pred_fallthru
          _
      $region32: #{tpu_custom_call.1} parent=5 // pred_fallthru
        _
      %p363 = scmp.le.s32.totalorder 2, %s13
      // Predicated region
      $region45: #{tpu_custom_call.1} parent=5 // pred_check
        %p364 = pneg %p363
      $region46: #{tpu_custom_call.1} parent=5 // pred_check_branch
        %366 = sbr.rel (%p364) target = $region48
      $region47: #{tpu_custom_call.1} parent=5 // pred_region
        %s367 = ssub.s32 %s13, 2
        // Predicated region
        $region49: #{tpu_custom_call.1} parent=47 // pred_check
          %p368 = pneg %p145
        $region50: #{tpu_custom_call.1} parent=47 // pred_check_branch
          %370 = sbr.rel (%p368) target = $region52
        $region51: #{tpu_custom_call.1} parent=47 // pred_region
          %s371 = sand.u32 %s130, 1
          %s372 = scalar_lea.sflag [#allocation4], %s371
          %s373 = sand.u32 %s130, 1
          %s374 = smul.addr %s373, 8
          %s375 = scalar_lea.vmem [#allocation5], %s374
          %376 = dma.done %s372, 128
        $region52: #{tpu_custom_call.1} parent=47 // pred_fallthru
          _
      $region48: #{tpu_custom_call.1} parent=5 // pred_fallthru
        _
    $region6: #{tpu_custom_call.1} parent=1 // loop_footer
      %s17 = sadd.s32 1, %s13
    $region7: #{tpu_custom_call.1} parent=1 // loop_footer_branch
      %12 = sbr.rel target = $region3
    $region8: #{tpu_custom_call.1} parent=1 // loop_exit
      _
    %377 = vsyncpa [#allocation3], 1
    %s378 = scalar_lea.sflag [#allocation3], 1
    %379 = vsyncpa %s378, 1
    %380 = vsyncpa [#allocation4], 1
    %s381 = scalar_lea.sflag [#allocation4], 1
    %382 = vsyncpa %s381, 1

</llo_original>
